<compile_context>
chip_gen: v7x
topology: tpu7x:2x2x1
jax: 0.10.0
libtpu: 0.0.40
codegen_flags: <defaults>
</compile_context>

<pallas_src>
import jax
import jax.numpy as jnp
from jax.experimental import pallas as pl
from jax.experimental.pallas import tpu as pltpu


def _round_up(x, m):
    return ((x + m - 1) // m) * m


def _chip_plan():
    """(nsplit, input-tile VMEM budget, scoped VMEM limit) per TPU generation."""
    kind = ""
    try:
        kind = jax.devices()[0].device_kind.lower()
    except Exception:  # defensive: default plan is safe everywhere
        pass
    if "v7" in kind:   # 2 TensorCores/chip, 64 MiB VMEM, ~3.2 TB/s HBM per TC
        return 2, 24 << 20, 48 << 20
    if "v6" in kind:   # 1 TensorCore, 128 MiB physical VMEM
        return 1, 32 << 20, 64 << 20
    if "v5" in kind:   # v5e/v5p: 1 TensorCore feeding this kernel, 128 MiB VMEM
        return 1, 24 << 20, 48 << 20
    return 1, 16 << 20, 32 << 20


def _plan_grid(hw, tile_cap, nsplit):
    """Pick (nsplit, tiles_per_split, hw_tile).

    Guarantees every grid block starts in-bounds (>= 1 valid column), so no
    wrapper-side padding is needed; the tail of the last block is masked inside
    the kernel instead.
    """
    while True:
        cols_per_core = _round_up(pl.cdiv(hw, nsplit), 128)
        tiles_per_split = pl.cdiv(cols_per_core, tile_cap)
        hw_tile = _round_up(pl.cdiv(cols_per_core, tiles_per_split), 128)
        if nsplit == 1 or (nsplit * tiles_per_split - 1) * hw_tile < hw:
            return nsplit, tiles_per_split, hw_tile
        nsplit = 1  # fall back rather than emit fully out-of-bounds blocks


def _make_dice_partial_kernel(hw_valid, hw_tile, tiles_per_split, need_mask):
    """Accumulate per-(B*C) spatial partial sums over one (R, hw_tile) tile."""

    def kernel(x_ref, t_ref, tsum_ref, inter_ref, union_ref):
        @pl.when(pl.program_id(1) == 0)
        def _init():
            tsum_ref[...] = jnp.zeros_like(tsum_ref)
            inter_ref[...] = jnp.zeros_like(inter_ref)
            union_ref[...] = jnp.zeros_like(union_ref)

        # Native-dtype DMA; math/accumulation in f32 (t_sum^2 needs f32 range).
        x = x_ref[...].astype(jnp.float32)       # (R, hw_tile)
        t = t_ref[...].astype(jnp.float32)       # (R, hw_tile)
        sig = jax.nn.sigmoid(x)                  # EUP transcendental (free slot)

        if need_mask:
            # Only generated when the tiling does not divide H*W exactly: zero
            # the out-of-bounds tail so it contributes nothing to the sums.
            col0 = (pl.program_id(0) * tiles_per_split + pl.program_id(1)) * hw_tile
            lane = jax.lax.broadcasted_iota(jnp.int32, (x.shape[0], hw_tile), 1)
            valid = (lane + col0) < hw_valid
            sig = jnp.where(valid, sig, 0.0)
            t = jnp.where(valid, t, 0.0)

        tsum_ref[0, :, :] += jnp.sum(t, axis=-1, keepdims=True)
        inter_ref[0, :, :] += jnp.sum(sig * t, axis=-1, keepdims=True)
        union_ref[0, :, :] += jnp.sum(sig * sig + t * t, axis=-1, keepdims=True)

    return kernel


def dice_loss(inputs, targets, smooth=1.0):
    """Pallas implementation of DiceLoss.forward.

    `smooth` is accepted but unused, exactly like the reference PyTorch module
    (its forward never reads the argument).
    """
    del smooth
    B, C, H, W = inputs.shape
    R = B * C
    HW = H * W

    # Lane-dense 2-D view: rows = B*C (sublanes), H*W on the lane axis.
    x = inputs.reshape(R, HW)
    t = targets.reshape(R, HW)

    nsplit, tile_budget, vmem_limit = _chip_plan()

    # Per-column VMEM cost: double-buffered native-dtype input tiles plus ~4
    # full-tile f32 temporaries (upcasts, sigmoid, products) live in the body.
    bytes_per_col = 2 * R * (x.dtype.itemsize + t.dtype.itemsize) + 4 * R * 4
    tile_cap = max(128, (tile_budget // bytes_per_col) // 128 * 128)

    nsplit, tiles_per_split, hw_tile = _plan_grid(HW, tile_cap, nsplit)
    need_mask = nsplit * tiles_per_split * hw_tile != HW

    # Cover pathological cases (huge B*C hitting the 128-column floor) so the
    # scoped limit never undercuts the actual tile footprint.
    est_bytes = hw_tile * bytes_per_col + 6 * nsplit * R * 4
    vmem_limit = max(vmem_limit, est_bytes + (4 << 20))

    n_elem = R * HW
    cost = pl.CostEstimate(
        flops=8 * n_elem,
        transcendentals=n_elem,
        bytes_accessed=n_elem * (x.dtype.itemsize + t.dtype.itemsize)
        + 3 * nsplit * R * 4,
    )

    acc_shape = jax.ShapeDtypeStruct((nsplit, R, 1), jnp.float32)
    acc_spec = pl.BlockSpec((1, R, 1), lambda c, i: (c, 0, 0))
    in_spec = pl.BlockSpec(
        (R, hw_tile), lambda c, i: (0, c * tiles_per_split + i))

    kernel = _make_dice_partial_kernel(HW, hw_tile, tiles_per_split, need_mask)

    tsum, inter, union = pl.pallas_call(
        kernel,
        out_shape=(acc_shape, acc_shape, acc_shape),
        grid_spec=pltpu.PrefetchScalarGridSpec(
            num_scalar_prefetch=0,
            grid=(nsplit, tiles_per_split),
            in_specs=[in_spec, in_spec],
            out_specs=(acc_spec, acc_spec, acc_spec),
        ),
        compiler_params=pltpu.CompilerParams(
            dimension_semantics=("parallel", "arbitrary"),
            vmem_limit_bytes=int(vmem_limit),
        ),
        cost_estimate=cost,
    )(x, t)

    # ---- tiny finalize on (B, C) scalars (plain XLA; negligible work) ----
    tsum = jnp.sum(tsum, axis=0).reshape(B, C)
    inter = jnp.sum(inter, axis=0).reshape(B, C)
    union = jnp.sum(union, axis=0).reshape(B, C)

    w = 1.0 / (tsum * tsum + 1e-10)
    numer = 2.0 * jnp.sum(w * inter, axis=1)
    denom = jnp.sum(w * union, axis=1)
    dice = jnp.sum(numer / (denom + 1e-10)) / B
    return 1.0 - dice


def _dice_loss_ref(inputs, targets):
    """Pure-JAX reference mirroring the PyTorch forward."""
    inputs = jax.nn.sigmoid(inputs.astype(jnp.float32))
    targets = targets.astype(jnp.float32)
    batch_size = inputs.shape[0]
    w = 1.0 / (jnp.sum(targets, axis=(2, 3)) ** 2 + 1e-10)
    intersection = jnp.sum(inputs * targets, axis=(2, 3))
    union = jnp.sum(inputs ** 2 + targets ** 2, axis=(2, 3))
    numer = 2.0 * jnp.sum(w * intersection, axis=1)
    denom = jnp.sum(w * union, axis=1)
    dice = jnp.sum(numer / (denom + 1e-10)) / batch_size
    return 1.0 - dice


if __name__ == "__main__":
    key = jax.random.PRNGKey(0)
    k1, k2 = jax.random.split(key)

    B, C, H, W = 2, 4, 16, 16
    inputs = jax.random.normal(k1, (B, C, H, W), dtype=jnp.float32)
    targets = jax.random.bernoulli(k2, p=0.3, shape=(B, C, H, W)).astype(jnp.float32)

    loss = jax.block_until_ready(jax.jit(dice_loss)(inputs, targets))
    ref = _dice_loss_ref(inputs, targets)

    assert jnp.allclose(loss, ref, rtol=1e-5, atol=1e-5), (loss, ref)
    print("KERNEL_OK")
</pallas_src>

<mosaic_0001>
module attributes {stable_mosaic.version = 11 : i64} {
  func.func @kernel(%arg0: i32, %arg1: i32, %arg2: memref<8x256xf32, #tpu.memory_space<vmem>>, %arg3: memref<8x256xf32, #tpu.memory_space<vmem>>, %arg4: memref<1x8x1xf32, #tpu.memory_space<vmem>>, %arg5: memref<1x8x1xf32, #tpu.memory_space<vmem>>, %arg6: memref<1x8x1xf32, #tpu.memory_space<vmem>>) attributes {dimension_semantics = [#tpu.dimension_semantics<parallel>, #tpu.dimension_semantics<arbitrary>], iteration_bounds = array<i64: 1, 1>, scalar_prefetch = 0 : i64, scratch_operands = 0 : i64, tpu.core_type = #tpu.core_type<tc>, window_params = [{transform_indices = @transform_0, window_bounds = array<i64: 8, 256>}, {transform_indices = @transform_1, window_bounds = array<i64: 8, 256>}, {transform_indices = @transform_2, window_bounds = array<i64: 1, 8, 1>}, {transform_indices = @transform_3, window_bounds = array<i64: 1, 8, 1>}, {transform_indices = @transform_4, window_bounds = array<i64: 1, 8, 1>}]} {
    %c0_i32 = arith.constant 0 : i32
    %0 = arith.cmpi eq, %arg1, %c0_i32 : i32
    %1 = arith.extui %0 : i1 to i32
    %c0_i32_0 = arith.constant 0 : i32
    %2 = arith.cmpi ne, %1, %c0_i32_0 : i32
    scf.if %2 {
      %cst_25 = arith.constant 0.000000e+00 : f32
      %38 = vector.broadcast %cst_25 : f32 to vector<1x8x1xf32>
      %c0_26 = arith.constant 0 : index
      %c0_27 = arith.constant 0 : index
      %c0_28 = arith.constant 0 : index
      %39 = vector.load %arg4[%c0_26, %c0_27, %c0_28] : memref<1x8x1xf32, #tpu.memory_space<vmem>>, vector<1x8x1xf32>
      tpu.vector_store %arg4[%c0_26, %c0_27, %c0_28], %38 {strides = array<i32>} : memref<1x8x1xf32, #tpu.memory_space<vmem>>, vector<1x8x1xf32>,
      %cst_29 = arith.constant 0.000000e+00 : f32
      %40 = vector.broadcast %cst_29 : f32 to vector<1x8x1xf32>
      %c0_30 = arith.constant 0 : index
      %c0_31 = arith.constant 0 : index
      %c0_32 = arith.constant 0 : index
      %41 = vector.load %arg5[%c0_30, %c0_31, %c0_32] : memref<1x8x1xf32, #tpu.memory_space<vmem>>, vector<1x8x1xf32>
      tpu.vector_store %arg5[%c0_30, %c0_31, %c0_32], %40 {strides = array<i32>} : memref<1x8x1xf32, #tpu.memory_space<vmem>>, vector<1x8x1xf32>,
      %cst_33 = arith.constant 0.000000e+00 : f32
      %42 = vector.broadcast %cst_33 : f32 to vector<1x8x1xf32>
      %c0_34 = arith.constant 0 : index
      %c0_35 = arith.constant 0 : index
      %c0_36 = arith.constant 0 : index
      %43 = vector.load %arg6[%c0_34, %c0_35, %c0_36] : memref<1x8x1xf32, #tpu.memory_space<vmem>>, vector<1x8x1xf32>
      tpu.vector_store %arg6[%c0_34, %c0_35, %c0_36], %42 {strides = array<i32>} : memref<1x8x1xf32, #tpu.memory_space<vmem>>, vector<1x8x1xf32>,
    } else {
    }
    %c0 = arith.constant 0 : index
    %c0_1 = arith.constant 0 : index
    %3 = vector.load %arg2[%c0, %c0_1] : memref<8x256xf32, #tpu.memory_space<vmem>>, vector<8x256xf32>
    %c0_2 = arith.constant 0 : index
    %c0_3 = arith.constant 0 : index
    %4 = vector.load %arg3[%c0_2, %c0_3] : memref<8x256xf32, #tpu.memory_space<vmem>>, vector<8x256xf32>
    %5 = arith.negf %3 : vector<8x256xf32>
    %6 = math.exp %5 : vector<8x256xf32>
    %cst = arith.constant 1.000000e+00 : f32
    %7 = vector.broadcast %cst : f32 to vector<8x256xf32>
    %8 = arith.addf %7, %6 : vector<8x256xf32>
    %9 = arith.divf %7, %8 : vector<8x256xf32>
    %c0_4 = arith.constant 0 : index
    %c0_5 = arith.constant 0 : index
    %c0_6 = arith.constant 0 : index
    %10 = vector.load %arg4[%c0_4, %c0_5, %c0_6] : memref<1x8x1xf32, #tpu.memory_space<vmem>>, vector<1x8x1xf32>
    %11 = vector.shape_cast %10 : vector<1x8x1xf32> to vector<8x1xf32>
    %cst_7 = arith.constant dense<0.000000e+00> : vector<8xf32>
    %12 = vector.multi_reduction <add>, %4, %cst_7 [1] : vector<8x256xf32> to vector<8xf32>
    %13 = vector.shape_cast %12 : vector<8xf32> to vector<8x1xf32>
    %14 = arith.addf %11, %13 : vector<8x1xf32>
    %c0_8 = arith.constant 0 : index
    %c0_9 = arith.constant 0 : index
    %c0_10 = arith.constant 0 : index
    %15 = vector.load %arg4[%c0_8, %c0_9, %c0_10] : memref<1x8x1xf32, #tpu.memory_space<vmem>>, vector<1x8x1xf32>
    %16 = vector.shape_cast %15 : vector<1x8x1xf32> to vector<8x1xf32>
    %17 = vector.shape_cast %14 : vector<8x1xf32> to vector<1x8x1xf32>
    tpu.vector_store %arg4[%c0_8, %c0_9, %c0_10], %17 {strides = array<i32>} : memref<1x8x1xf32, #tpu.memory_space<vmem>>, vector<1x8x1xf32>,
    %c0_11 = arith.constant 0 : index
    %c0_12 = arith.constant 0 : index
    %c0_13 = arith.constant 0 : index
    %18 = vector.load %arg5[%c0_11, %c0_12, %c0_13] : memref<1x8x1xf32, #tpu.memory_space<vmem>>, vector<1x8x1xf32>
    %19 = vector.shape_cast %18 : vector<1x8x1xf32> to vector<8x1xf32>
    %20 = arith.mulf %9, %4 : vector<8x256xf32>
    %cst_14 = arith.constant dense<0.000000e+00> : vector<8xf32>
    %21 = vector.multi_reduction <add>, %20, %cst_14 [1] : vector<8x256xf32> to vector<8xf32>
    %22 = vector.shape_cast %21 : vector<8xf32> to vector<8x1xf32>
    %23 = arith.addf %19, %22 : vector<8x1xf32>
    %c0_15 = arith.constant 0 : index
    %c0_16 = arith.constant 0 : index
    %c0_17 = arith.constant 0 : index
    %24 = vector.load %arg5[%c0_15, %c0_16, %c0_17] : memref<1x8x1xf32, #tpu.memory_space<vmem>>, vector<1x8x1xf32>
    %25 = vector.shape_cast %24 : vector<1x8x1xf32> to vector<8x1xf32>
    %26 = vector.shape_cast %23 : vector<8x1xf32> to vector<1x8x1xf32>
    tpu.vector_store %arg5[%c0_15, %c0_16, %c0_17], %26 {strides = array<i32>} : memref<1x8x1xf32, #tpu.memory_space<vmem>>, vector<1x8x1xf32>,
    %c0_18 = arith.constant 0 : index
    %c0_19 = arith.constant 0 : index
    %c0_20 = arith.constant 0 : index
    %27 = vector.load %arg6[%c0_18, %c0_19, %c0_20] : memref<1x8x1xf32, #tpu.memory_space<vmem>>, vector<1x8x1xf32>
    %28 = vector.shape_cast %27 : vector<1x8x1xf32> to vector<8x1xf32>
    %29 = arith.mulf %9, %9 : vector<8x256xf32>
    %30 = arith.mulf %4, %4 : vector<8x256xf32>
    %31 = arith.addf %29, %30 : vector<8x256xf32>
    %cst_21 = arith.constant dense<0.000000e+00> : vector<8xf32>
    %32 = vector.multi_reduction <add>, %31, %cst_21 [1] : vector<8x256xf32> to vector<8xf32>
    %33 = vector.shape_cast %32 : vector<8xf32> to vector<8x1xf32>
    %34 = arith.addf %28, %33 : vector<8x1xf32>
    %c0_22 = arith.constant 0 : index
    %c0_23 = arith.constant 0 : index
    %c0_24 = arith.constant 0 : index
    %35 = vector.load %arg6[%c0_22, %c0_23, %c0_24] : memref<1x8x1xf32, #tpu.memory_space<vmem>>, vector<1x8x1xf32>
    %36 = vector.shape_cast %35 : vector<1x8x1xf32> to vector<8x1xf32>
    %37 = vector.shape_cast %34 : vector<8x1xf32> to vector<1x8x1xf32>
    tpu.vector_store %arg6[%c0_22, %c0_23, %c0_24], %37 {strides = array<i32>} : memref<1x8x1xf32, #tpu.memory_space<vmem>>, vector<1x8x1xf32>,
    return
  }
  func.func @transform_0(%arg0: i32, %arg1: i32) -> (i32, i32) {
    %c1_i32 = arith.constant 1 : i32
    %0 = arith.muli %arg0, %c1_i32 : i32
    %1 = arith.addi %0, %arg1 : i32
    %c0_i32 = arith.constant 0 : i32
    %c0_i32_0 = arith.constant 0 : i32
    return %c0_i32, %1 : i32, i32
  }
  func.func @transform_1(%arg0: i32, %arg1: i32) -> (i32, i32) {
    %c1_i32 = arith.constant 1 : i32
    %0 = arith.muli %arg0, %c1_i32 : i32
    %1 = arith.addi %0, %arg1 : i32
    %c0_i32 = arith.constant 0 : i32
    %c0_i32_0 = arith.constant 0 : i32
    return %c0_i32, %1 : i32, i32
  }
  func.func @transform_2(%arg0: i32, %arg1: i32) -> (i32, i32, i32) {
    %c0_i32 = arith.constant 0 : i32
    %c0_i32_0 = arith.constant 0 : i32
    %c0_i32_1 = arith.constant 0 : i32
    return %arg0, %c0_i32, %c0_i32_0 : i32, i32, i32
  }
  func.func @transform_3(%arg0: i32, %arg1: i32) -> (i32, i32, i32) {
    %c0_i32 = arith.constant 0 : i32
    %c0_i32_0 = arith.constant 0 : i32
    %c0_i32_1 = arith.constant 0 : i32
    return %arg0, %c0_i32, %c0_i32_0 : i32, i32, i32
  }
  func.func @transform_4(%arg0: i32, %arg1: i32) -> (i32, i32, i32) {
    %c0_i32 = arith.constant 0 : i32
    %c0_i32_0 = arith.constant 0 : i32
    %c0_i32_1 = arith.constant 0 : i32
    return %arg0, %c0_i32, %c0_i32_0 : i32, i32, i32
  }
}

</mosaic_0001>

<llo_original>
// kernel: dice_loss.1
$region0: #{dice_loss.1}
  #allocation0 [shape = 'u32[]', space=smem, size = 0x4, offset = 0x4, fixed_abs, tag = 'smem constant byte address 0x4 - core index']
  #allocation1 [shape = 'u32[144,128]{1,0:T(1,128)}', space=vmem, size = 0x12000, scoped, tag = 'internal scratch']
  %s0 = inlined_call_operand.vmem [shape: f32[8,256], index: 0, kind: input, shape index: {}]
  %s1 = inlined_call_operand.vmem [shape: f32[8,256], index: 1, kind: input, shape index: {}]
  %s2 = inlined_call_operand.vmem [shape: f32[1,8,1], index: 2, kind: output, shape index: {0}]
  %s3 = inlined_call_operand.vmem [shape: f32[1,8,1], index: 3, kind: output, shape index: {1}]
  %s4 = inlined_call_operand.vmem [shape: f32[1,8,1], index: 4, kind: output, shape index: {2}]
  %5 = xla_tuple %s2, %s3, %s4
  %s6 = sld [smem:[#allocation0]]
  $region38: #{dice_loss.1} parent=0
    _
  %s8 = ssub.s32 1, %s6
  %s9 = scalar_select 0, %s8, %s6
  // Predicated region
  $region2: #{dice_loss.1} parent=0 // pred_check
    _
  $region3: #{dice_loss.1} parent=0 // pred_check_branch
    %11 = sbr.rel (0) target = $region5
  $region4: #{dice_loss.1} parent=0 // pred_region
    %s12 = sadd.s32 0, 0
    %s13 = smul.u32 2, %s12
    %p14 = scmp.lt.s32.totalorder %s13, 1
    %s15 = scalar_select %p14, %s13, 1
    %s16 = smul.addr %s15, 8
    %s17 = scalar_lea.vmem %s0, %s16
    %s18 = sadd.s32 0, 0
    %s19 = smul.u32 2, %s18
  $region5: #{dice_loss.1} parent=0 // pred_fallthru
    _
  // Predicated region
  $region6: #{dice_loss.1} parent=0 // pred_check
    _
  $region7: #{dice_loss.1} parent=0 // pred_check_branch
    %21 = sbr.rel (0) target = $region9
  $region8: #{dice_loss.1} parent=0 // pred_region
    %s22 = sadd.s32 0, 0
    %s23 = smul.u32 2, %s22
    %p24 = scmp.lt.s32.totalorder %s23, 1
    %s25 = scalar_select %p24, %s23, 1
    %s26 = smul.addr %s25, 8
    %s27 = scalar_lea.vmem %s1, %s26
    %s28 = sadd.s32 0, 0
    %s29 = smul.u32 2, %s28
  $region9: #{dice_loss.1} parent=0 // pred_fallthru
    _
  %s30 = sadd.s32 0, 0
  %s31 = smul.u32 2, %s30
  %p32 = scmp.lt.s32.totalorder %s31, 1
  %s33 = scalar_select %p32, %s31, 1
  %s34 = smul.addr %s33, 8
  %s35 = scalar_lea.vmem %s0, %s34
  %s36 = sadd.s32 0, 0
  %s37 = smul.u32 2, %s36
  %p38 = scmp.lt.s32.totalorder %s37, 1
  %s39 = scalar_select %p38, %s37, 1
  %s40 = smul.addr %s39, 8
  %s41 = scalar_lea.vmem %s1, %s40
  %s42 = sadd.s32 0, 0
  %s43 = smul.u32 2, %s42
  %p44 = scmp.lt.s32.totalorder %s43, 1
  %s45 = scalar_select %p44, %s43, 1
  %s46 = smul.addr %s45, 8
  %s47 = scalar_lea.vmem %s0, %s46
  %s48 = sadd.s32 0, 0
  %s49 = smul.u32 2, %s48
  %s50 = sadd.s32 0, 0
  %s51 = smul.u32 2, %s50
  %p52 = scmp.lt.s32.totalorder %s51, 1
  %s53 = scalar_select %p52, %s51, 1
  %s54 = smul.addr %s53, 8
  %s55 = scalar_lea.vmem %s1, %s54
  %s56 = sadd.s32 0, 0
  %s57 = smul.u32 2, %s56
  %p58 = scmp.eq.s32.totalorder 0, 0
  // Predicated region
  $region10: #{dice_loss.1} parent=0 // pred_check
    %p59 = pneg %p58
  $region11: #{dice_loss.1} parent=0 // pred_check_branch
    %61 = sbr.rel (%p59) target = $region13
  $region12: #{dice_loss.1} parent=0 // pred_region
    %vm62 = vcmask 7168
    %63 = vst.msk [vmem:[%s2] sm:$0xff] %vm62, 0.0
    %64 = vst.msk [vmem:[%s3] sm:$0xff] %vm62, 0.0
    %65 = vst.msk [vmem:[%s4] sm:$0xff] %vm62, 0.0
  $region13: #{dice_loss.1} parent=0 // pred_fallthru
    _
  %v66 = vld [vmem:[%s47] sm:$0xff]
  %v67 = vld [vmem:[%s47 + $0x8] sm:$0xff]
  %v68 = vld [vmem:[%s55] sm:$0xff]
  %v69 = vld [vmem:[%s55 + $0x8] sm:$0xff]
  %v70 = vxor.u32 %v66, 2147483648
  %v71 = vxor.u32 %v67, 2147483648
  %v72 = vmul.f32 %v70, 1.442695
  %v73 = vpow.pop %v72
  %v74 = vmul.f32 %v71, 1.442695
  %v75 = vpow.pop %v74
  %v76 = vadd.f32 %v73, 1.0
  %v77 = vadd.f32 %v75, 1.0
  %v78 = vrcp.pop %v76
  %v79 = vmul.f32 1.0, %v78
  %v80 = vrcp.pop %v77
  %v81 = vmul.f32 1.0, %v80
  %v82 = vld [vmem:[%s2] sm:$0xff]
  %v83 = vadd.f32 %v68, %v69
  %84 = vadd.xlane.f32.xlu0 %v83
  %v85 = vpop.xlane.xlu0 %84
  %v86 = vadd.f32 %v82, %v85
  %vm87 = vcmask 7168
  %88 = vst.msk [vmem:[%s2] sm:$0xff] %vm87, %v86
  %v89 = vld [vmem:[%s3] sm:$0xff]
  %v90 = vmul.f32 %v79, %v68
  %v91 = vmul.f32 %v81, %v69
  %v92 = vadd.f32 %v90, %v91
  %93 = vadd.xlane.f32.xlu0 %v92
  %v94 = vpop.xlane.xlu0 %93
  %v95 = vadd.f32 %v89, %v94
  %96 = vst.msk [vmem:[%s3] sm:$0xff] %vm87, %v95
  %v97 = vld [vmem:[%s4] sm:$0xff]
  %v98 = vmul.f32 %v79, %v79
  %v99 = vmul.f32 %v81, %v81
  %v100 = vmul.f32 %v68, %v68
  %v101 = vmul.f32 %v69, %v69
  %v102 = vadd.f32 %v98, %v100
  %v103 = vadd.f32 %v99, %v101
  %v104 = vadd.f32 %v102, %v103
  %105 = vadd.xlane.f32.xlu0 %v104
  %v106 = vpop.xlane.xlu0 %105
  %v107 = vadd.f32 %v97, %v106
  %108 = vst.msk [vmem:[%s4] sm:$0xff] %vm87, %v107
  // Predicated region
  $region14: #{dice_loss.1} parent=0 // pred_check
    _
  $region15: #{dice_loss.1} parent=0 // pred_check_branch
    %110 = sbr.rel (0) target = $region17
  $region16: #{dice_loss.1} parent=0 // pred_region
    _
  $region17: #{dice_loss.1} parent=0 // pred_fallthru
    _
  // Predicated region
  $region18: #{dice_loss.1} parent=0 // pred_check
    _
  $region19: #{dice_loss.1} parent=0 // pred_check_branch
    %112 = sbr.rel (0) target = $region21
  $region20: #{dice_loss.1} parent=0 // pred_region
    _
  $region21: #{dice_loss.1} parent=0 // pred_fallthru
    _
  // Predicated region
  $region22: #{dice_loss.1} parent=0 // pred_check
    _
  $region23: #{dice_loss.1} parent=0 // pred_check_branch
    %114 = sbr.rel (0) target = $region25
  $region24: #{dice_loss.1} parent=0 // pred_region
    _
  $region25: #{dice_loss.1} parent=0 // pred_fallthru
    _
  // Predicated region
  $region26: #{dice_loss.1} parent=0 // pred_check
    _
  $region27: #{dice_loss.1} parent=0 // pred_check_branch
    %116 = sbr.rel (0) target = $region29
  $region28: #{dice_loss.1} parent=0 // pred_region
    _
  $region29: #{dice_loss.1} parent=0 // pred_fallthru
    _
  // Predicated region
  $region30: #{dice_loss.1} parent=0 // pred_check
    _
  $region31: #{dice_loss.1} parent=0 // pred_check_branch
    %118 = sbr.rel (0) target = $region33
  $region32: #{dice_loss.1} parent=0 // pred_region
    _
  $region33: #{dice_loss.1} parent=0 // pred_fallthru
    _
  // Predicated region
  $region34: #{dice_loss.1} parent=0 // pred_check
    _
  $region35: #{dice_loss.1} parent=0 // pred_check_branch
    %120 = sbr.rel (0) target = $region37
  $region36: #{dice_loss.1} parent=0 // pred_region
    _
  $region37: #{dice_loss.1} parent=0 // pred_fallthru
    _

</llo_original>
